<compile_context>
chip_gen: v5e
topology: v5e:2x2
jax: 0.10.0
libtpu: 0.0.40
codegen_flags: <defaults>
</compile_context>

<pallas_src>
import functools
import math

import jax
import jax.numpy as jnp
from jax import lax
from jax.experimental import pallas as pl
from jax.experimental.pallas import tpu as pltpu

NUM_CLASS = 10
EMB_DIM = 32
HID_DIM = 16
LATENT = 2

MAX_ROW_TILE = 2048          # rows (x128 lanes) per grid step -> 256K elems/step
TARGET_GRID_STEPS = 8        # keep >=~8 steps for pipelining / v7x megacore
SMALL_BATCH_FAST_PATH = 2048  # below this, plain XLA gather beats the kernel


def _round_up(x, m):
    return (x + m - 1) // m * m


def text_encoder_kernel(tbl_ref, idx_ref, out_ref, *, chunk):
    # tbl_ref: SMEM [LATENT*NUM_CLASS] f32  -- folded net, feature-major, flat
    # idx_ref: VMEM [R_TILE, 128]    int32  -- batch rows x 128 lanes
    # out_ref: VMEM [LATENT, R_TILE, 128] f32
    # Hoist all SMEM scalar reads of the folded table above the loop.
    vals = [[tbl_ref[l * NUM_CLASS + c] for c in range(NUM_CLASS)]
            for l in range(LATENT)]
    r_tile = idx_ref.shape[0]
    n_chunks = r_tile // chunk

    def body(s, carry):
        r0 = pl.multiple_of(s * chunk, chunk)
        idx = idx_ref[pl.ds(r0, chunk), :]                      # [chunk, 128]
        accs = [jnp.zeros((chunk, 128), jnp.float32) for _ in range(LATENT)]
        # Per-class VPU compare/select: exact gather, fully packed vregs.
        for c in range(NUM_CLASS):
            m = idx == c
            for l in range(LATENT):
                accs[l] = jnp.where(m, vals[l][c], accs[l])
        for l in range(LATENT):
            out_ref[l, pl.ds(r0, chunk), :] = accs[l]           # dense slabs
        return carry

    lax.fori_loop(0, n_chunks, body, 0)


def fold_network(table, w1, b1, w2, b2):
    """Collapse Embedding->Linear->ReLU->Linear into a [NUM_CLASS, LATENT] table.

    Exact: the embedding input is one of NUM_CLASS discrete classes, so ReLU
    composes cleanly per class.  Trivially cheap (10x32 / 10x16 / 10x2).
    """
    h = jnp.maximum(
        jnp.dot(table, w1, precision=lax.Precision.HIGHEST) + b1, 0.0)
    return jnp.dot(h, w2, precision=lax.Precision.HIGHEST) + b2


def text_encoder_forward(idx, table, w1, b1, w2, b2, *, force_kernel=False):
    """idx: int [B]; returns f32 [B, LATENT] (matching the PyTorch module)."""
    b = idx.shape[0]
    out_table = fold_network(table, w1, b1, w2, b2)       # [NUM_CLASS, LATENT]

    if not force_kernel and b < SMALL_BATCH_FAST_PATH:
        # Fast path: fused XLA gather on the tiny folded table.
        return out_table[idx.astype(jnp.int32)]

    # ---- kernel path: (8,128)-dense 2D layout ----
    tbl_flat = out_table.T.reshape(-1)                    # [LATENT*NUM_CLASS]

    rows = -(-b // 128)                                   # batch rows of 128 lanes
    r_tile = -(-rows // TARGET_GRID_STEPS)
    gran = 64 if r_tile >= 64 else 8
    r_tile = min(MAX_ROW_TILE, _round_up(r_tile, gran))
    chunk = math.gcd(r_tile, 64)                          # divides r_tile, mult of 8
    rows_p = _round_up(rows, r_tile)
    bp = rows_p * 128

    idx_flat = idx.astype(jnp.int32)
    if bp != b:
        # Minimal pad (only up to the tile granularity actually used).
        idx_flat = jnp.pad(idx_flat, (0, bp - b))
    idx2d = idx_flat.reshape(rows_p, 128)

    out_fm = pl.pallas_call(
        functools.partial(text_encoder_kernel, chunk=chunk),
        out_shape=jax.ShapeDtypeStruct((LATENT, rows_p, 128), jnp.float32),
        grid=(rows_p // r_tile,),
        in_specs=[
            pl.BlockSpec(memory_space=pltpu.MemorySpace.SMEM),  # folded table
            pl.BlockSpec((r_tile, 128), lambda i: (i, 0)),      # idx tile
        ],
        out_specs=pl.BlockSpec((LATENT, r_tile, 128), lambda i: (0, i, 0)),
        compiler_params=pltpu.CompilerParams(
            dimension_semantics=("parallel",)),
    )(tbl_flat, idx2d)

    # Consumers that can accept the feature-major [LATENT, B] layout should use
    # out_fm directly; we transpose here only to match PyTorch's [B, LATENT].
    return out_fm.reshape(LATENT, bp)[:, :b].T


def init_params(key):
    """Deterministic parameter init mirroring the PyTorch module's shapes."""
    k0, k1, k2, k3, k4 = jax.random.split(key, 5)
    # nn.Embedding: N(0,1)
    table = jax.random.normal(k0, (NUM_CLASS, EMB_DIM), jnp.float32)
    # nn.Linear: uniform(-1/sqrt(fan_in), 1/sqrt(fan_in)); weight stored [out,in]
    lim1 = 1.0 / jnp.sqrt(EMB_DIM)
    w1_t = jax.random.uniform(k1, (HID_DIM, EMB_DIM), jnp.float32, -lim1, lim1)
    b1 = jax.random.uniform(k2, (HID_DIM,), jnp.float32, -lim1, lim1)
    lim2 = 1.0 / jnp.sqrt(HID_DIM)
    w2_t = jax.random.uniform(k3, (LATENT, HID_DIM), jnp.float32, -lim2, lim2)
    b2 = jax.random.uniform(k4, (LATENT,), jnp.float32, -lim2, lim2)
    # Pre-transpose Linear weights to [in, out] for the math below.
    return table, w1_t.T, b1, w2_t.T, b2


def reference_forward(idx, table, w1, b1, w2, b2):
    emb = table[idx]                                                   # [B, 32]
    h = jnp.maximum(
        jnp.dot(emb, w1, precision=lax.Precision.HIGHEST) + b1, 0.0)   # [B, 16]
    return jnp.dot(h, w2, precision=lax.Precision.HIGHEST) + b2        # [B, LATENT]


if __name__ == "__main__":
    key = jax.random.PRNGKey(0)
    kp, kx = jax.random.split(key)
    params = init_params(kp)

    # Small batch: exercises the XLA fast path AND (forced) the Pallas kernel.
    batch = 8
    idx = jax.random.randint(kx, (batch,), 0, NUM_CLASS, dtype=jnp.int32)
    ref = reference_forward(idx, *params)

    out_fast = jax.block_until_ready(text_encoder_forward(idx, *params))
    out_kern = jax.block_until_ready(
        text_encoder_forward(idx, *params, force_kernel=True))
    assert out_fast.shape == (batch, LATENT)
    assert out_kern.shape == (batch, LATENT)
    assert jnp.allclose(out_fast, ref, atol=1e-5, rtol=1e-5)
    assert jnp.allclose(out_kern, ref, atol=1e-5, rtol=1e-5)

    # Larger batch: multi-step grid on the kernel path.
    batch2 = 4096
    idx2 = jax.random.randint(kx, (batch2,), 0, NUM_CLASS, dtype=jnp.int32)
    out2 = jax.block_until_ready(text_encoder_forward(idx2, *params))
    ref2 = reference_forward(idx2, *params)
    assert out2.shape == (batch2, LATENT)
    assert jnp.allclose(out2, ref2, atol=1e-5, rtol=1e-5)

    print("KERNEL_OK")
</pallas_src>

<mosaic_0001>
module attributes {stable_mosaic.version = 11 : i64} {
  func.func @text_encoder_kernel(%arg0: i32, %arg1: memref<20xf32, #tpu.memory_space<smem>>, %arg2: memref<8x128xi32, #tpu.memory_space<vmem>>, %arg3: memref<2x8x128xf32, #tpu.memory_space<vmem>>) attributes {dimension_semantics = [#tpu.dimension_semantics<parallel>], iteration_bounds = array<i64: 1>, scalar_prefetch = 0 : i64, scratch_operands = 0 : i64, tpu.core_type = #tpu.core_type<tc>, window_params = [{transform_indices = @transform_0, window_bounds = array<i64: 20>}, {transform_indices = @transform_1, window_bounds = array<i64: 8, 128>}, {transform_indices = @transform_2, window_bounds = array<i64: 2, 8, 128>}]} {
    %c0 = arith.constant 0 : index
    %0 = memref.load %arg1[%c0] : memref<20xf32, #tpu.memory_space<smem>>
    %c1 = arith.constant 1 : index
    %1 = memref.load %arg1[%c1] : memref<20xf32, #tpu.memory_space<smem>>
    %c2 = arith.constant 2 : index
    %2 = memref.load %arg1[%c2] : memref<20xf32, #tpu.memory_space<smem>>
    %c3 = arith.constant 3 : index
    %3 = memref.load %arg1[%c3] : memref<20xf32, #tpu.memory_space<smem>>
    %c4 = arith.constant 4 : index
    %4 = memref.load %arg1[%c4] : memref<20xf32, #tpu.memory_space<smem>>
    %c5 = arith.constant 5 : index
    %5 = memref.load %arg1[%c5] : memref<20xf32, #tpu.memory_space<smem>>
    %c6 = arith.constant 6 : index
    %6 = memref.load %arg1[%c6] : memref<20xf32, #tpu.memory_space<smem>>
    %c7 = arith.constant 7 : index
    %7 = memref.load %arg1[%c7] : memref<20xf32, #tpu.memory_space<smem>>
    %c8 = arith.constant 8 : index
    %8 = memref.load %arg1[%c8] : memref<20xf32, #tpu.memory_space<smem>>
    %c9 = arith.constant 9 : index
    %9 = memref.load %arg1[%c9] : memref<20xf32, #tpu.memory_space<smem>>
    %c10 = arith.constant 10 : index
    %10 = memref.load %arg1[%c10] : memref<20xf32, #tpu.memory_space<smem>>
    %c11 = arith.constant 11 : index
    %11 = memref.load %arg1[%c11] : memref<20xf32, #tpu.memory_space<smem>>
    %c12 = arith.constant 12 : index
    %12 = memref.load %arg1[%c12] : memref<20xf32, #tpu.memory_space<smem>>
    %c13 = arith.constant 13 : index
    %13 = memref.load %arg1[%c13] : memref<20xf32, #tpu.memory_space<smem>>
    %c14 = arith.constant 14 : index
    %14 = memref.load %arg1[%c14] : memref<20xf32, #tpu.memory_space<smem>>
    %c15 = arith.constant 15 : index
    %15 = memref.load %arg1[%c15] : memref<20xf32, #tpu.memory_space<smem>>
    %c16 = arith.constant 16 : index
    %16 = memref.load %arg1[%c16] : memref<20xf32, #tpu.memory_space<smem>>
    %c17 = arith.constant 17 : index
    %17 = memref.load %arg1[%c17] : memref<20xf32, #tpu.memory_space<smem>>
    %c18 = arith.constant 18 : index
    %18 = memref.load %arg1[%c18] : memref<20xf32, #tpu.memory_space<smem>>
    %c19 = arith.constant 19 : index
    %19 = memref.load %arg1[%c19] : memref<20xf32, #tpu.memory_space<smem>>
    %c0_i32 = arith.constant 0 : i32
    %c8_i32 = arith.constant 8 : i32
    %20 = arith.muli %c0_i32, %c8_i32 : i32
    %21 = tpu.assume_multiple %20, 8 : i32
    %22 = arith.index_cast %21 : i32 to index
    %c0_0 = arith.constant 0 : index
    %23 = vector.load %arg2[%22, %c0_0] : memref<8x128xi32, #tpu.memory_space<vmem>>, vector<8x128xi32>
    %cst = arith.constant 0.000000e+00 : f32
    %24 = vector.broadcast %cst : f32 to vector<8x128xf32>
    %cst_1 = arith.constant 0.000000e+00 : f32
    %25 = vector.broadcast %cst_1 : f32 to vector<8x128xf32>
    %c0_i32_2 = arith.constant 0 : i32
    %26 = vector.broadcast %c0_i32_2 : i32 to vector<8x128xi32>
    %27 = arith.cmpi eq, %23, %26 : vector<8x128xi32>
    %28 = vector.broadcast %0 : f32 to vector<8x128xf32>
    %29 = arith.select %27, %28, %24 : vector<8x128xi1>, vector<8x128xf32>
    %30 = vector.broadcast %10 : f32 to vector<8x128xf32>
    %31 = arith.select %27, %30, %25 : vector<8x128xi1>, vector<8x128xf32>
    %c1_i32 = arith.constant 1 : i32
    %32 = vector.broadcast %c1_i32 : i32 to vector<8x128xi32>
    %33 = arith.cmpi eq, %23, %32 : vector<8x128xi32>
    %34 = vector.broadcast %1 : f32 to vector<8x128xf32>
    %35 = arith.select %33, %34, %29 : vector<8x128xi1>, vector<8x128xf32>
    %36 = vector.broadcast %11 : f32 to vector<8x128xf32>
    %37 = arith.select %33, %36, %31 : vector<8x128xi1>, vector<8x128xf32>
    %c2_i32 = arith.constant 2 : i32
    %38 = vector.broadcast %c2_i32 : i32 to vector<8x128xi32>
    %39 = arith.cmpi eq, %23, %38 : vector<8x128xi32>
    %40 = vector.broadcast %2 : f32 to vector<8x128xf32>
    %41 = arith.select %39, %40, %35 : vector<8x128xi1>, vector<8x128xf32>
    %42 = vector.broadcast %12 : f32 to vector<8x128xf32>
    %43 = arith.select %39, %42, %37 : vector<8x128xi1>, vector<8x128xf32>
    %c3_i32 = arith.constant 3 : i32
    %44 = vector.broadcast %c3_i32 : i32 to vector<8x128xi32>
    %45 = arith.cmpi eq, %23, %44 : vector<8x128xi32>
    %46 = vector.broadcast %3 : f32 to vector<8x128xf32>
    %47 = arith.select %45, %46, %41 : vector<8x128xi1>, vector<8x128xf32>
    %48 = vector.broadcast %13 : f32 to vector<8x128xf32>
    %49 = arith.select %45, %48, %43 : vector<8x128xi1>, vector<8x128xf32>
    %c4_i32 = arith.constant 4 : i32
    %50 = vector.broadcast %c4_i32 : i32 to vector<8x128xi32>
    %51 = arith.cmpi eq, %23, %50 : vector<8x128xi32>
    %52 = vector.broadcast %4 : f32 to vector<8x128xf32>
    %53 = arith.select %51, %52, %47 : vector<8x128xi1>, vector<8x128xf32>
    %54 = vector.broadcast %14 : f32 to vector<8x128xf32>
    %55 = arith.select %51, %54, %49 : vector<8x128xi1>, vector<8x128xf32>
    %c5_i32 = arith.constant 5 : i32
    %56 = vector.broadcast %c5_i32 : i32 to vector<8x128xi32>
    %57 = arith.cmpi eq, %23, %56 : vector<8x128xi32>
    %58 = vector.broadcast %5 : f32 to vector<8x128xf32>
    %59 = arith.select %57, %58, %53 : vector<8x128xi1>, vector<8x128xf32>
    %60 = vector.broadcast %15 : f32 to vector<8x128xf32>
    %61 = arith.select %57, %60, %55 : vector<8x128xi1>, vector<8x128xf32>
    %c6_i32 = arith.constant 6 : i32
    %62 = vector.broadcast %c6_i32 : i32 to vector<8x128xi32>
    %63 = arith.cmpi eq, %23, %62 : vector<8x128xi32>
    %64 = vector.broadcast %6 : f32 to vector<8x128xf32>
    %65 = arith.select %63, %64, %59 : vector<8x128xi1>, vector<8x128xf32>
    %66 = vector.broadcast %16 : f32 to vector<8x128xf32>
    %67 = arith.select %63, %66, %61 : vector<8x128xi1>, vector<8x128xf32>
    %c7_i32 = arith.constant 7 : i32
    %68 = vector.broadcast %c7_i32 : i32 to vector<8x128xi32>
    %69 = arith.cmpi eq, %23, %68 : vector<8x128xi32>
    %70 = vector.broadcast %7 : f32 to vector<8x128xf32>
    %71 = arith.select %69, %70, %65 : vector<8x128xi1>, vector<8x128xf32>
    %72 = vector.broadcast %17 : f32 to vector<8x128xf32>
    %73 = arith.select %69, %72, %67 : vector<8x128xi1>, vector<8x128xf32>
    %c8_i32_3 = arith.constant 8 : i32
    %74 = vector.broadcast %c8_i32_3 : i32 to vector<8x128xi32>
    %75 = arith.cmpi eq, %23, %74 : vector<8x128xi32>
    %76 = vector.broadcast %8 : f32 to vector<8x128xf32>
    %77 = arith.select %75, %76, %71 : vector<8x128xi1>, vector<8x128xf32>
    %78 = vector.broadcast %18 : f32 to vector<8x128xf32>
    %79 = arith.select %75, %78, %73 : vector<8x128xi1>, vector<8x128xf32>
    %c9_i32 = arith.constant 9 : i32
    %80 = vector.broadcast %c9_i32 : i32 to vector<8x128xi32>
    %81 = arith.cmpi eq, %23, %80 : vector<8x128xi32>
    %82 = vector.broadcast %9 : f32 to vector<8x128xf32>
    %83 = arith.select %81, %82, %77 : vector<8x128xi1>, vector<8x128xf32>
    %84 = vector.broadcast %19 : f32 to vector<8x128xf32>
    %85 = arith.select %81, %84, %79 : vector<8x128xi1>, vector<8x128xf32>
    %c0_4 = arith.constant 0 : index
    %86 = arith.index_cast %21 : i32 to index
    %c0_5 = arith.constant 0 : index
    %87 = vector.load %arg3[%c0_4, %86, %c0_5] : memref<2x8x128xf32, #tpu.memory_space<vmem>>, vector<1x8x128xf32>
    %88 = vector.shape_cast %87 : vector<1x8x128xf32> to vector<8x128xf32>
    %89 = vector.shape_cast %83 : vector<8x128xf32> to vector<1x8x128xf32>
    tpu.vector_store %arg3[%c0_4, %86, %c0_5], %89 {strides = array<i32>} : memref<2x8x128xf32, #tpu.memory_space<vmem>>, vector<1x8x128xf32>,
    %c1_6 = arith.constant 1 : index
    %90 = arith.index_cast %21 : i32 to index
    %c0_7 = arith.constant 0 : index
    %91 = vector.load %arg3[%c1_6, %90, %c0_7] : memref<2x8x128xf32, #tpu.memory_space<vmem>>, vector<1x8x128xf32>
    %92 = vector.shape_cast %91 : vector<1x8x128xf32> to vector<8x128xf32>
    %93 = vector.shape_cast %85 : vector<8x128xf32> to vector<1x8x128xf32>
    tpu.vector_store %arg3[%c1_6, %90, %c0_7], %93 {strides = array<i32>} : memref<2x8x128xf32, #tpu.memory_space<vmem>>, vector<1x8x128xf32>,
    %c1_i32_8 = arith.constant 1 : i32
    return
  }
  func.func @transform_0(%arg0: i32) -> i32 {
    %c0_i32 = arith.constant 0 : i32
    %c0_i32_0 = arith.constant 0 : i32
    return %c0_i32 : i32
  }
  func.func @transform_1(%arg0: i32) -> (i32, i32) {
    %c0_i32 = arith.constant 0 : i32
    %c0_i32_0 = arith.constant 0 : i32
    return %arg0, %c0_i32 : i32, i32
  }
  func.func @transform_2(%arg0: i32) -> (i32, i32, i32) {
    %c0_i32 = arith.constant 0 : i32
    %c0_i32_0 = arith.constant 0 : i32
    %c0_i32_1 = arith.constant 0 : i32
    return %c0_i32, %arg0, %c0_i32_0 : i32, i32, i32
  }
}

</mosaic_0001>

<llo_original>
// kernel: tpu_custom_call.1
$region0: #{tpu_custom_call.1}
  #allocation0 [shape = 'u32[]', space=smem, size = 0x4, offset = 0x4, fixed_abs, tag = 'smem constant byte address 0x4 - core index']
  #allocation1 [shape = 'u32[72,128]{1,0:T(1,128)}', space=vmem, size = 0x9000, scoped, tag = 'internal scratch']
  %s0 = inlined_call_operand.hbm [shape: f32[20], index: 0, kind: input, shape index: {}]
  %s1 = inlined_call_operand.hbm [shape: s32[8,128], index: 1, kind: input, shape index: {}]
  %s2 = inlined_call_operand.hbm [shape: f32[2,8,128], index: 2, kind: output, shape index: {}]
  %s3 = sld [smem:[#allocation0]]
  $region26: #{tpu_custom_call.1} parent=0
    _
  %s5 = ssub.s32 1, %s3
  %s6 = scalar_select 0, %s5, %s3
  $region1: #{tpu_custom_call.1} parent=0
    #allocation2 [shape = 'u8[512]{0}', space=smem, size = 0x200, scoped, tag = 'input window, operand 0, single buffered']
    #allocation3 [shape = 's32[1]{0}', space=sflag, size = 0x4, scoped, tag = 'scoped memory for tpu_custom_call.1']
    #allocation4 [shape = 's32[1]{0}', space=sflag, size = 0x4, scoped, tag = 'scoped memory for tpu_custom_call.1']
    #allocation5 [shape = 's32[1]{0}', space=sflag, size = 0x4, scoped, tag = 'scoped memory for tpu_custom_call.1']
    #allocation6 [shape = 'u8[4096]{0}', space=vmem, size = 0x1000, scoped, tag = 'input window, operand 1, single buffered']
    #allocation7 [shape = 'u8[8192]{0}', space=vmem, size = 0x2000, scoped, tag = 'output window, operand 0, single buffered']
    %7 = vsyncpa [#allocation5], 0
    %8 = vsyncpa [#allocation3], 0
    %9 = vsyncpa [#allocation4], 0
    // Predicated region
    $region2: #{tpu_custom_call.1} parent=1 // pred_check
      _
    $region3: #{tpu_custom_call.1} parent=1 // pred_check_branch
      %11 = sbr.rel (0) target = $region5
    $region4: #{tpu_custom_call.1} parent=1 // pred_region
      %13 = vsyncadd [#allocation5], 0
      %s15 = sshll.u32 %s0, 4
      %s16 = int_to_ptr.hbm [resolvable:$true] %s15
      %18 = dma.hbm_to_smem %s16, 16, [#allocation2], [#allocation5]
    $region5: #{tpu_custom_call.1} parent=1 // pred_fallthru
      _
    // Predicated region
    $region6: #{tpu_custom_call.1} parent=1 // pred_check
      _
    $region7: #{tpu_custom_call.1} parent=1 // pred_check_branch
      %20 = sbr.rel (0) target = $region9
    $region8: #{tpu_custom_call.1} parent=1 // pred_region
      %22 = vsyncadd [#allocation3], 0
      %s24 = sshll.u32 %s1, 4
      %s25 = int_to_ptr.hbm [resolvable:$true] %s24
      %s26 = sshll.u32 [#allocation6], 4
      %s27 = int_to_ptr.vmem [resolvable:$true] %s26
      %29 = dma.hbm_to_vmem [thread:$0]  %s25, 128, %s27, [#allocation3]
    $region9: #{tpu_custom_call.1} parent=1 // pred_fallthru
      _
    // Predicated region
    $region10: #{tpu_custom_call.1} parent=1 // pred_check
      _
    $region11: #{tpu_custom_call.1} parent=1 // pred_check_branch
      %31 = sbr.rel (0) target = $region13
    $region12: #{tpu_custom_call.1} parent=1 // pred_region
      %33 = dma.done [#allocation5], 16
    $region13: #{tpu_custom_call.1} parent=1 // pred_fallthru
      _
    // Predicated region
    $region14: #{tpu_custom_call.1} parent=1 // pred_check
      _
    $region15: #{tpu_custom_call.1} parent=1 // pred_check_branch
      %35 = sbr.rel (0) target = $region17
    $region16: #{tpu_custom_call.1} parent=1 // pred_region
      %37 = dma.done [#allocation3], 128
    $region17: #{tpu_custom_call.1} parent=1 // pred_fallthru
      _
    %38 = sfence
    %s39 = sld [smem:[#allocation2]]
    %s40 = sld [smem:[#allocation2 + $0x1]]
    %s41 = sld [smem:[#allocation2 + $0x2]]
    %s42 = sld [smem:[#allocation2 + $0x3]]
    %s43 = sld [smem:[#allocation2 + $0x4]]
    %s44 = sld [smem:[#allocation2 + $0x5]]
    %s45 = sld [smem:[#allocation2 + $0x6]]
    %s46 = sld [smem:[#allocation2 + $0x7]]
    %s47 = sld [smem:[#allocation2 + $0x8]]
    %s48 = sld [smem:[#allocation2 + $0x9]]
    %s49 = sld [smem:[#allocation2 + $0xa]]
    %s50 = sld [smem:[#allocation2 + $0xb]]
    %s51 = sld [smem:[#allocation2 + $0xc]]
    %s52 = sld [smem:[#allocation2 + $0xd]]
    %s53 = sld [smem:[#allocation2 + $0xe]]
    %s54 = sld [smem:[#allocation2 + $0xf]]
    %s55 = sld [smem:[#allocation2 + $0x10]]
    %s56 = sld [smem:[#allocation2 + $0x11]]
    %s57 = sld [smem:[#allocation2 + $0x12]]
    %s58 = sld [smem:[#allocation2 + $0x13]]
    %v59 = vld [vmem:[#allocation6] sm:$0xff]
    %vm60 = vcmp.eq.s32.totalorder %v59, 0
    %v61 = vstv %s39
    %v62 = vsel %vm60, %v61, 0.0
    %v63 = vstv %s49
    %v64 = vsel %vm60, %v63, 0.0
    %vm65 = vcmp.eq.s32.totalorder %v59, 1
    %v66 = vstv %s40
    %v67 = vsel %vm65, %v66, %v62
    %v68 = vstv %s50
    %v69 = vsel %vm65, %v68, %v64
    %vm70 = vcmp.eq.s32.totalorder %v59, 2
    %v71 = vstv %s41
    %v72 = vsel %vm70, %v71, %v67
    %v73 = vstv %s51
    %v74 = vsel %vm70, %v73, %v69
    %vm75 = vcmp.eq.s32.totalorder %v59, 3
    %v76 = vstv %s42
    %v77 = vsel %vm75, %v76, %v72
    %v78 = vstv %s52
    %v79 = vsel %vm75, %v78, %v74
    %vm80 = vcmp.eq.s32.totalorder %v59, 4
    %v81 = vstv %s43
    %v82 = vsel %vm80, %v81, %v77
    %v83 = vstv %s53
    %v84 = vsel %vm80, %v83, %v79
    %vm85 = vcmp.eq.s32.totalorder %v59, 5
    %v86 = vstv %s44
    %v87 = vsel %vm85, %v86, %v82
    %v88 = vstv %s54
    %v89 = vsel %vm85, %v88, %v84
    %vm90 = vcmp.eq.s32.totalorder %v59, 6
    %v91 = vstv %s45
    %v92 = vsel %vm90, %v91, %v87
    %v93 = vstv %s55
    %v94 = vsel %vm90, %v93, %v89
    %vm95 = vcmp.eq.s32.totalorder %v59, 7
    %v96 = vstv %s46
    %v97 = vsel %vm95, %v96, %v92
    %v98 = vstv %s56
    %v99 = vsel %vm95, %v98, %v94
    %vm100 = vcmp.eq.s32.totalorder %v59, 8
    %v101 = vstv %s47
    %v102 = vsel %vm100, %v101, %v97
    %v103 = vstv %s57
    %v104 = vsel %vm100, %v103, %v99
    %vm105 = vcmp.eq.s32.totalorder %v59, 9
    %v106 = vstv %s48
    %v107 = vsel %vm105, %v106, %v102
    %v108 = vstv %s58
    %v109 = vsel %vm105, %v108, %v104
    %110 = vst [vmem:[#allocation7] sm:$0xff] %v107
    %s111 = sadd.s32 0, 8
    %s112 = scalar_lea.vmem [#allocation7], %s111
    %113 = vst [vmem:[%s112] sm:$0xff] %v109
    // Predicated region
    $region18: #{tpu_custom_call.1} parent=1 // pred_check
      _
    $region19: #{tpu_custom_call.1} parent=1 // pred_check_branch
      %115 = sbr.rel (0) target = $region21
    $region20: #{tpu_custom_call.1} parent=1 // pred_region
      %117 = vsyncadd [#allocation4], 0
      %s118 = sshll.u32 [#allocation7], 4
      %s119 = int_to_ptr.vmem [resolvable:$true] %s118
      %s120 = sshll.u32 %s2, 4
      %s121 = int_to_ptr.hbm [resolvable:$true] %s120
      %126 = dma.vmem_to_hbm [thread:$0]  %s119, 256, %s121, [#allocation4], 128, 128, 8
    $region21: #{tpu_custom_call.1} parent=1 // pred_fallthru
      _
    // Predicated region
    $region22: #{tpu_custom_call.1} parent=1 // pred_check
      _
    $region23: #{tpu_custom_call.1} parent=1 // pred_check_branch
      %128 = sbr.rel (0) target = $region25
    $region24: #{tpu_custom_call.1} parent=1 // pred_region
      %130 = dma.done [#allocation4], 256
    $region25: #{tpu_custom_call.1} parent=1 // pred_fallthru
      _
    %131 = vsyncpa [#allocation3], 1
    %132 = vsyncpa [#allocation4], 1
    %133 = vsyncpa [#allocation5], 1

</llo_original>
